<compile_context>
chip_gen: v7x
topology: tpu7x:2x2x1
jax: 0.10.0
libtpu: 0.0.40
codegen_flags: <defaults>
</compile_context>

<pallas_src>
import functools

import numpy as np
import jax
import jax.numpy as jnp
from jax.experimental import pallas as pl
from jax.experimental.pallas import tpu as pltpu

_BN_EPS = 1e-5


def conv_bn_relu_kernel(p_ref, w_ref, fold_ref, gb_ref, o_ref, *, inv_m):
    """One fused MXU contraction + train-mode BatchNorm + ReLU.

    p_ref:    (N*Ho, Wo*K)       im2col patches, wo-major / (kh,kw,cin)-minor
    w_ref:    (Wo*K, Wo*Cout)    block-diagonal conv weights (kron(I_Wo, w2))
    fold_ref: (Wo*Cout, Wo*Cout) channel-equality mask (i%Cout == j%Cout)
    gb_ref:   (2, Wo*Cout)       row 0 = gamma, row 1 = beta, lane-tiled
    o_ref:    (N*Ho, Wo*Cout)    lane-dense output slab (last dim = 128 here)
    """
    # --- Convolution: one MXU contraction, lane-dense result directly. -------
    acc = jnp.dot(p_ref[...], w_ref[...], preferred_element_type=jnp.float32)

    # --- BatchNorm2d statistics (training mode: batch mean, biased variance
    #     over N, H, W).  Channel co lives at lanes {wo*Cout + co}.  Reduce
    #     sublanes with dense full-lane sums of x and x^2, then fold the Wo
    #     lane-groups AND re-broadcast per-channel results across lanes with a
    #     single tiny matmul against the precomputed channel-equality mask
    #     (MXU is idle here; no lane<->sublane relayout, no in-kernel iota). --
    col_sum = jnp.sum(acc, axis=0, keepdims=True)                    # (1, cols)
    col_sqsum = jnp.sum(acc * acc, axis=0, keepdims=True)            # (1, cols)
    sums = jnp.concatenate([col_sum, col_sqsum], axis=0)             # (2, cols)
    folded = jnp.dot(sums, fold_ref[...],
                     preferred_element_type=jnp.float32) * inv_m     # (2, cols)
    mean_l = folded[0:1, :]
    var_l = folded[1:2, :] - mean_l * mean_l                         # E[x^2]-E[x]^2

    # --- BN folded into one FMA-shaped epilogue, then ReLU. ------------------
    gb = gb_ref[...]                                                 # (2, cols)
    inv_std = jax.lax.rsqrt(var_l + _BN_EPS)                         # EUP slot
    scale_l = gb[0:1, :] * inv_std                                   # (1, cols)
    bias_l = gb[1:2, :] - mean_l * scale_l                           # (1, cols)
    o_ref[...] = jnp.maximum(acc * scale_l + bias_l, 0.0).astype(o_ref.dtype)


def conv2d_bn_relu(x_nchw, w_oihw, gamma, beta, *, stride=1, padding=1):
    """Wrapper: NCHW / OIHW (PyTorch convention) in, NCHW out."""
    N, Cin, H, W = x_nchw.shape
    Cout, _, KH, KW = w_oihw.shape
    assert stride == 1  # TODO(synk): stride > 1 not exercised by this instance.
    Ho = H + 2 * padding - KH + 1
    Wo = W + 2 * padding - KW + 1
    K = KH * KW * Cin
    M = N * Ho * Wo
    rows = N * Ho
    cols = Wo * Cout

    # Layout glue stays in plain JAX (XLA fuses transpose + pad + window gather
    # into one producer fusion): NCHW -> padded NHWC -> im2col laid out as
    # (N*Ho, Wo*K) so the kernel's single matmul emits the lane-dense output
    # slab with no in-kernel relayout.
    x_nhwc = jnp.transpose(x_nchw, (0, 2, 3, 1)).astype(jnp.float32)
    x_pad = jnp.pad(x_nhwc, ((0, 0), (padding, padding), (padding, padding), (0, 0)))
    patches = jnp.stack(
        [x_pad[:, i:i + Ho, j:j + Wo, :] for i in range(KH) for j in range(KW)],
        axis=3)                                   # (N, Ho, Wo, KH*KW, Cin)
    p = patches.reshape(rows, Wo * K)             # (N*Ho, Wo*K), wo-major

    # OIHW -> (KH*KW*Cin, Cout) matching the (kh, kw, cin) patch ordering, then
    # block-diagonal (Wo*K, Wo*Cout): block wo holds w2 for the wo-th lane group.
    w2 = jnp.transpose(w_oihw, (2, 3, 1, 0)).reshape(K, Cout).astype(jnp.float32)
    w_bd = jnp.kron(jnp.eye(Wo, dtype=jnp.float32), w2)   # (Wo*K, Wo*Cout)

    # Channel-equality fold mask: constant, built host-side (no in-kernel iota).
    lane = np.arange(cols)
    fold = jnp.asarray(
        (lane[:, None] % Cout == lane[None, :] % Cout).astype(np.float32))

    # BN affine params merged into one (2, Wo*Cout) lane-tiled input.
    gamma_l = jnp.tile(gamma.reshape(Cout).astype(jnp.float32), Wo)
    beta_l = jnp.tile(beta.reshape(Cout).astype(jnp.float32), Wo)
    gb = jnp.stack([gamma_l, beta_l], axis=0)              # (2, cols)

    bytes_accessed = 4 * (p.size + w_bd.size + fold.size + gb.size + rows * cols)
    cost = pl.CostEstimate(
        flops=2 * rows * (Wo * K) * cols + 2 * 2 * cols * cols,
        transcendentals=cols,                 # rsqrt epilogue
        bytes_accessed=bytes_accessed)

    out_slab = pl.pallas_call(
        functools.partial(conv_bn_relu_kernel, inv_m=1.0 / M),
        out_shape=jax.ShapeDtypeStruct((rows, cols), jnp.float32),
        in_specs=[
            pl.BlockSpec(memory_space=pltpu.MemorySpace.VMEM),
            pl.BlockSpec(memory_space=pltpu.MemorySpace.VMEM),
            pl.BlockSpec(memory_space=pltpu.MemorySpace.VMEM),
            pl.BlockSpec(memory_space=pltpu.MemorySpace.VMEM),
        ],
        out_specs=pl.BlockSpec(memory_space=pltpu.MemorySpace.VMEM),
        cost_estimate=cost,
    )(p, w_bd, fold, gb)

    # Lane-dense slab -> NCHW for the PyTorch-convention caller.
    out_nhwc = out_slab.reshape(N, Ho, Wo, Cout)
    return jnp.transpose(out_nhwc, (0, 3, 1, 2))


def _reference(x_nchw, w_oihw, gamma, beta, *, padding=1, eps=_BN_EPS):
    """Pure-JAX reference matching PyTorch Conv2d + train-mode BN + ReLU."""
    y = jax.lax.conv_general_dilated(
        x_nchw, w_oihw, window_strides=(1, 1),
        padding=[(padding, padding), (padding, padding)],
        dimension_numbers=("NCHW", "OIHW", "NCHW"))
    mean = jnp.mean(y, axis=(0, 2, 3), keepdims=True)
    var = jnp.mean((y - mean) ** 2, axis=(0, 2, 3), keepdims=True)  # biased
    y = (y - mean) / jnp.sqrt(var + eps)
    y = y * gamma.reshape(1, -1, 1, 1) + beta.reshape(1, -1, 1, 1)
    return jnp.maximum(y, 0.0)


if __name__ == "__main__":
    # Module config: Conv2dBn(in_channels=4, out_channels=8, kernel_size=3,
    #                         stride=1, padding=1, bias=False, use_bn=True,
    #                         activation=ReLU)
    N, Cin, H, W = 2, 4, 16, 16
    Cout, KH, KW = 8, 3, 3

    key = jax.random.PRNGKey(0)
    k_x, k_w, k_g, k_b = jax.random.split(key, 4)

    x = jax.random.normal(k_x, (N, Cin, H, W), dtype=jnp.float32)
    w = jax.random.normal(k_w, (Cout, Cin, KH, KW), dtype=jnp.float32) * 0.1
    gamma = 1.0 + 0.1 * jax.random.normal(k_g, (Cout,), dtype=jnp.float32)
    beta = 0.1 * jax.random.normal(k_b, (Cout,), dtype=jnp.float32)

    out = conv2d_bn_relu(x, w, gamma, beta, padding=1)
    out = jax.block_until_ready(out)

    ref = _reference(x, w, gamma, beta, padding=1)
    assert out.shape == (N, Cout, H, W), out.shape
    max_err = float(jnp.max(jnp.abs(out - ref)))
    assert jnp.allclose(out, ref, atol=2e-4, rtol=2e-4), max_err

    print("KERNEL_OK")
</pallas_src>

<mosaic_0001>
module attributes {stable_mosaic.version = 11 : i64} {
  func.func @conv_bn_relu_kernel(%arg0: memref<32x576xf32, #tpu.memory_space<vmem>>, %arg1: memref<576x128xf32, #tpu.memory_space<vmem>>, %arg2: memref<128x128xf32, #tpu.memory_space<vmem>>, %arg3: memref<2x128xf32, #tpu.memory_space<vmem>>, %arg4: memref<32x128xf32, #tpu.memory_space<vmem>>) attributes {dimension_semantics = [], scalar_prefetch = 0 : i64, scratch_operands = 0 : i64, tpu.core_type = #tpu.core_type<tc>} {
    %c0 = arith.constant 0 : index
    %c0_0 = arith.constant 0 : index
    %0 = vector.load %arg0[%c0, %c0_0] : memref<32x576xf32, #tpu.memory_space<vmem>>, vector<32x576xf32>
    %c0_1 = arith.constant 0 : index
    %c0_2 = arith.constant 0 : index
    %1 = vector.load %arg1[%c0_1, %c0_2] : memref<576x128xf32, #tpu.memory_space<vmem>>, vector<576x128xf32>
    %cst = arith.constant dense<0.000000e+00> : vector<32x128xf32>
    %2 = tpu.matmul %0, %1, %cst {dimension_numbers = #tpu.dot_dimension_numbers<[1], [0], [0], [1], [0, 0, 1, 1], [], []>} : vector<32x576xf32>, vector<576x128xf32>, vector<32x128xf32> -> vector<32x128xf32>
    %cst_3 = arith.constant dense<0.000000e+00> : vector<128xf32>
    %3 = vector.multi_reduction <add>, %2, %cst_3 [0] : vector<32x128xf32> to vector<128xf32>
    %4 = vector.shape_cast %3 : vector<128xf32> to vector<1x128xf32>
    %5 = arith.mulf %2, %2 : vector<32x128xf32>
    %cst_4 = arith.constant dense<0.000000e+00> : vector<128xf32>
    %6 = vector.multi_reduction <add>, %5, %cst_4 [0] : vector<32x128xf32> to vector<128xf32>
    %7 = vector.shape_cast %6 : vector<128xf32> to vector<1x128xf32>
    %8 = tpu.concatenate %4, %7 in 0 : vector<1x128xf32>, vector<1x128xf32> -> vector<2x128xf32>
    %c0_5 = arith.constant 0 : index
    %c0_6 = arith.constant 0 : index
    %9 = vector.load %arg2[%c0_5, %c0_6] : memref<128x128xf32, #tpu.memory_space<vmem>>, vector<128x128xf32>
    %cst_7 = arith.constant dense<0.000000e+00> : vector<2x128xf32>
    %10 = tpu.matmul %8, %9, %cst_7 {dimension_numbers = #tpu.dot_dimension_numbers<[1], [0], [0], [1], [0, 0, 1, 1], [], []>} : vector<2x128xf32>, vector<128x128xf32>, vector<2x128xf32> -> vector<2x128xf32>
    %cst_8 = arith.constant 0.001953125 : f32
    %11 = vector.broadcast %cst_8 : f32 to vector<2x128xf32>
    %12 = arith.mulf %10, %11 : vector<2x128xf32>
    %13 = vector.extract_strided_slice %12 {offsets = [0, 0], sizes = [1, 128], strides = [1, 1]} : vector<2x128xf32> to vector<1x128xf32>
    %14 = vector.extract_strided_slice %12 {offsets = [1, 0], sizes = [1, 128], strides = [1, 1]} : vector<2x128xf32> to vector<1x128xf32>
    %15 = arith.mulf %13, %13 : vector<1x128xf32>
    %16 = arith.subf %14, %15 : vector<1x128xf32>
    %c0_9 = arith.constant 0 : index
    %c0_10 = arith.constant 0 : index
    %17 = vector.load %arg3[%c0_9, %c0_10] : memref<2x128xf32, #tpu.memory_space<vmem>>, vector<2x128xf32>
    %cst_11 = arith.constant 9.99999974E-6 : f32
    %18 = vector.broadcast %cst_11 : f32 to vector<1x128xf32>
    %19 = arith.addf %16, %18 : vector<1x128xf32>
    %20 = math.rsqrt %19 : vector<1x128xf32>
    %21 = vector.extract_strided_slice %17 {offsets = [0, 0], sizes = [1, 128], strides = [1, 1]} : vector<2x128xf32> to vector<1x128xf32>
    %22 = arith.mulf %21, %20 : vector<1x128xf32>
    %23 = vector.extract_strided_slice %17 {offsets = [1, 0], sizes = [1, 128], strides = [1, 1]} : vector<2x128xf32> to vector<1x128xf32>
    %24 = arith.mulf %13, %22 : vector<1x128xf32>
    %25 = arith.subf %23, %24 : vector<1x128xf32>
    %26 = vector.broadcast %22 : vector<1x128xf32> to vector<32x128xf32>
    %27 = arith.mulf %2, %26 : vector<32x128xf32>
    %28 = vector.broadcast %25 : vector<1x128xf32> to vector<32x128xf32>
    %29 = arith.addf %27, %28 : vector<32x128xf32>
    %cst_12 = arith.constant 0.000000e+00 : f32
    %30 = vector.broadcast %cst_12 : f32 to vector<32x128xf32>
    %31 = arith.maximumf %29, %30 : vector<32x128xf32>
    %c0_13 = arith.constant 0 : index
    %c0_14 = arith.constant 0 : index
    %32 = vector.load %arg4[%c0_13, %c0_14] : memref<32x128xf32, #tpu.memory_space<vmem>>, vector<32x128xf32>
    tpu.vector_store %arg4[%c0_13, %c0_14], %31 {strides = array<i32>} : memref<32x128xf32, #tpu.memory_space<vmem>>, vector<32x128xf32>,
    return
  }
}

</mosaic_0001>

<llo_original>
// kernel: tpu_custom_call.1
$region0: #{tpu_custom_call.1}
  #allocation0 [shape = 'u32[]', space=smem, size = 0x4, offset = 0x4, fixed_abs, tag = 'smem constant byte address 0x4 - core index']
  #allocation1 [shape = 'u32[144,128]{1,0:T(1,128)}', space=vmem, size = 0x12000, scoped, tag = 'internal scratch']
  %s0 = inlined_call_operand.hbm [shape: f32[32,576], index: 0, kind: input, shape index: {}]
  %s1 = inlined_call_operand.hbm [shape: f32[576,128], index: 1, kind: input, shape index: {}]
  %s2 = inlined_call_operand.hbm [shape: f32[128,128], index: 2, kind: input, shape index: {}]
  %s3 = inlined_call_operand.vmem [shape: f32[2,128], index: 3, kind: input, shape index: {}]
  %s4 = inlined_call_operand.hbm [shape: f32[32,128], index: 4, kind: output, shape index: {}]
  %s5 = sld [smem:[#allocation0]]
  $region38: #{tpu_custom_call.1} parent=0
    _
  %s7 = ssub.s32 1, %s5
  %s8 = scalar_select 0, %s7, %s5
  $region1: #{tpu_custom_call.1} parent=0
    #allocation2 [shape = 'u8[81920]{0}', space=vmem, size = 0x14000, scoped, tag = 'input window, operand 0, single buffered']
    #allocation3 [shape = 's32[1]{0}', space=sflag, size = 0x4, scoped, tag = 'scoped memory for tpu_custom_call.1']
    #allocation4 [shape = 's32[1]{0}', space=sflag, size = 0x4, scoped, tag = 'scoped memory for tpu_custom_call.1']
    #allocation5 [shape = 'u8[294912]{0}', space=vmem, size = 0x48000, scoped, tag = 'input window, operand 1, single buffered']
    #allocation6 [shape = 's32[1]{0}', space=sflag, size = 0x4, scoped, tag = 'scoped memory for tpu_custom_call.1']
    #allocation7 [shape = 'u8[65536]{0}', space=vmem, size = 0x10000, scoped, tag = 'input window, operand 2, single buffered']
    #allocation8 [shape = 'u8[16384]{0}', space=vmem, size = 0x4000, scoped, tag = 'output window, operand 0, single buffered']
    %9 = vsyncpa [#allocation3], 0
    %10 = vsyncpa [#allocation6], 0
    %11 = vsyncpa [#allocation4], 0
    // Predicated region
    $region2: #{tpu_custom_call.1} parent=1 // pred_check
      _
    $region3: #{tpu_custom_call.1} parent=1 // pred_check_branch
      %13 = sbr.rel (0) target = $region5
    $region4: #{tpu_custom_call.1} parent=1 // pred_region
      %s15 = ssub.s32 2560, 2560
      %16 = vsyncadd [#allocation3], %s15
      %s17 = sshll.u32 [#allocation2], 4
      %s18 = int_to_ptr.vmem [resolvable:$true] %s17
      %23 = dma.hbm_to_vmem [thread:$0]  %s0, 2560, %s18, [#allocation3], 640, 640, 40
    $region5: #{tpu_custom_call.1} parent=1 // pred_fallthru
      _
    // Predicated region
    $region6: #{tpu_custom_call.1} parent=1 // pred_check
      _
    $region7: #{tpu_custom_call.1} parent=1 // pred_check_branch
      %25 = sbr.rel (0) target = $region9
    $region8: #{tpu_custom_call.1} parent=1 // pred_region
      %s27 = ssub.s32 9216, 9216
      %28 = vsyncadd [#allocation6], %s27
      %s29 = sshll.u32 [#allocation5], 4
      %s30 = int_to_ptr.vmem [resolvable:$true] %s29
      %35 = dma.hbm_to_vmem [thread:$0]  %s1, 9216, %s30, [#allocation6], 128, 128, 8
    $region9: #{tpu_custom_call.1} parent=1 // pred_fallthru
      _
    // Predicated region
    $region10: #{tpu_custom_call.1} parent=1 // pred_check
      _
    $region11: #{tpu_custom_call.1} parent=1 // pred_check_branch
      %37 = sbr.rel (0) target = $region13
    $region12: #{tpu_custom_call.1} parent=1 // pred_region
      %s39 = ssub.s32 2048, 2048
      %40 = vsyncadd [#allocation6], %s39
      %s41 = sshll.u32 [#allocation7], 4
      %s42 = int_to_ptr.vmem [resolvable:$true] %s41
      %47 = dma.hbm_to_vmem [thread:$0]  %s2, 2048, %s42, [#allocation6], 128, 128, 8
    $region13: #{tpu_custom_call.1} parent=1 // pred_fallthru
      _
    // Predicated region
    $region14: #{tpu_custom_call.1} parent=1 // pred_check
      _
    $region15: #{tpu_custom_call.1} parent=1 // pred_check_branch
      %49 = sbr.rel (0) target = $region17
    $region16: #{tpu_custom_call.1} parent=1 // pred_region
      _
    $region17: #{tpu_custom_call.1} parent=1 // pred_fallthru
      _
    // Predicated region
    $region18: #{tpu_custom_call.1} parent=1 // pred_check
      _
    $region19: #{tpu_custom_call.1} parent=1 // pred_check_branch
      %51 = sbr.rel (0) target = $region21
    $region20: #{tpu_custom_call.1} parent=1 // pred_region
      %52 = dma.done [#allocation3], 2560
    $region21: #{tpu_custom_call.1} parent=1 // pred_fallthru
      _
    // Predicated region
    $region22: #{tpu_custom_call.1} parent=1 // pred_check
      _
    $region23: #{tpu_custom_call.1} parent=1 // pred_check_branch
      %54 = sbr.rel (0) target = $region25
    $region24: #{tpu_custom_call.1} parent=1 // pred_region
      %55 = dma.done [#allocation6], 9216
    $region25: #{tpu_custom_call.1} parent=1 // pred_fallthru
      _
    // Predicated region
    $region26: #{tpu_custom_call.1} parent=1 // pred_check
      _
    $region27: #{tpu_custom_call.1} parent=1 // pred_check_branch
      %57 = sbr.rel (0) target = $region29
    $region28: #{tpu_custom_call.1} parent=1 // pred_region
      %58 = dma.done [#allocation6], 2048
    $region29: #{tpu_custom_call.1} parent=1 // pred_fallthru
      _
    %v59 = vld [vmem:[#allocation2] sm:$0xff]
    %v60 = vld [vmem:[#allocation2 + $0x8] sm:$0xff]
    %v61 = vld [vmem:[#allocation2 + $0x10] sm:$0xff]
    %v62 = vld [vmem:[#allocation2 + $0x18] sm:$0xff]
    %v63 = vld [vmem:[#allocation2 + $0x20] sm:$0xff]
    %v64 = vld [vmem:[#allocation2 + $0x28] sm:$0xff]
    %v65 = vld [vmem:[#allocation2 + $0x30] sm:$0xff]
    %v66 = vld [vmem:[#allocation2 + $0x38] sm:$0xff]
    %v67 = vld [vmem:[#allocation2 + $0x40] sm:$0xff]
    %v68 = vld [vmem:[#allocation2 + $0x48] sm:$0xff]
    %v69 = vld [vmem:[#allocation2 + $0x50] sm:$0xff]
    %v70 = vld [vmem:[#allocation2 + $0x58] sm:$0xff]
    %v71 = vld [vmem:[#allocation2 + $0x60] sm:$0xff]
    %v72 = vld [vmem:[#allocation2 + $0x68] sm:$0xff]
    %v73 = vld [vmem:[#allocation2 + $0x70] sm:$0xff]
    %v74 = vld [vmem:[#allocation2 + $0x78] sm:$0xff]
    %v75 = vld [vmem:[#allocation2 + $0x80] sm:$0xff]
    %v76 = vld [vmem:[#allocation2 + $0x88] sm:$0xff]
    %v77 = vld [vmem:[#allocation2 + $0x90] sm:$0xff]
    %v78 = vld [vmem:[#allocation2 + $0x98] sm:$0xff]
    %v79 = vld [vmem:[#allocation5] sm:$0xff]
    %v80 = vld [vmem:[#allocation5 + $0x8] sm:$0xff]
    %v81 = vld [vmem:[#allocation5 + $0x10] sm:$0xff]
    %v82 = vld [vmem:[#allocation5 + $0x18] sm:$0xff]
    %v83 = vld [vmem:[#allocation5 + $0x20] sm:$0xff]
    %v84 = vld [vmem:[#allocation5 + $0x28] sm:$0xff]
    %v85 = vld [vmem:[#allocation5 + $0x30] sm:$0xff]
    %v86 = vld [vmem:[#allocation5 + $0x38] sm:$0xff]
    %v87 = vld [vmem:[#allocation5 + $0x40] sm:$0xff]
    %v88 = vld [vmem:[#allocation5 + $0x48] sm:$0xff]
    %v89 = vld [vmem:[#allocation5 + $0x50] sm:$0xff]
    %v90 = vld [vmem:[#allocation5 + $0x58] sm:$0xff]
    %v91 = vld [vmem:[#allocation5 + $0x60] sm:$0xff]
    %v92 = vld [vmem:[#allocation5 + $0x68] sm:$0xff]
    %v93 = vld [vmem:[#allocation5 + $0x70] sm:$0xff]
    %v94 = vld [vmem:[#allocation5 + $0x78] sm:$0xff]
    %v95 = vld [vmem:[#allocation5 + $0x80] sm:$0xff]
    %v96 = vld [vmem:[#allocation5 + $0x88] sm:$0xff]
    %v97 = vld [vmem:[#allocation5 + $0x90] sm:$0xff]
    %v98 = vld [vmem:[#allocation5 + $0x98] sm:$0xff]
    %v99 = vld [vmem:[#allocation5 + $0xa0] sm:$0xff]
    %v100 = vld [vmem:[#allocation5 + $0xa8] sm:$0xff]
    %v101 = vld [vmem:[#allocation5 + $0xb0] sm:$0xff]
    %v102 = vld [vmem:[#allocation5 + $0xb8] sm:$0xff]
    %v103 = vld [vmem:[#allocation5 + $0xc0] sm:$0xff]
    %v104 = vld [vmem:[#allocation5 + $0xc8] sm:$0xff]
    %v105 = vld [vmem:[#allocation5 + $0xd0] sm:$0xff]
    %v106 = vld [vmem:[#allocation5 + $0xd8] sm:$0xff]
    %v107 = vld [vmem:[#allocation5 + $0xe0] sm:$0xff]
    %v108 = vld [vmem:[#allocation5 + $0xe8] sm:$0xff]
    %v109 = vld [vmem:[#allocation5 + $0xf0] sm:$0xff]
    %v110 = vld [vmem:[#allocation5 + $0xf8] sm:$0xff]
    %v111 = vld [vmem:[#allocation5 + $0x100] sm:$0xff]
    %v112 = vld [vmem:[#allocation5 + $0x108] sm:$0xff]
    %v113 = vld [vmem:[#allocation5 + $0x110] sm:$0xff]
    %v114 = vld [vmem:[#allocation5 + $0x118] sm:$0xff]
    %v115 = vld [vmem:[#allocation5 + $0x120] sm:$0xff]
    %v116 = vld [vmem:[#allocation5 + $0x128] sm:$0xff]
    %v117 = vld [vmem:[#allocation5 + $0x130] sm:$0xff]
    %v118 = vld [vmem:[#allocation5 + $0x138] sm:$0xff]
    %v119 = vld [vmem:[#allocation5 + $0x140] sm:$0xff]
    %v120 = vld [vmem:[#allocation5 + $0x148] sm:$0xff]
    %v121 = vld [vmem:[#allocation5 + $0x150] sm:$0xff]
    %v122 = vld [vmem:[#allocation5 + $0x158] sm:$0xff]
    %v123 = vld [vmem:[#allocation5 + $0x160] sm:$0xff]
    %v124 = vld [vmem:[#allocation5 + $0x168] sm:$0xff]
    %v125 = vld [vmem:[#allocation5 + $0x170] sm:$0xff]
    %v126 = vld [vmem:[#allocation5 + $0x178] sm:$0xff]
    %v127 = vld [vmem:[#allocation5 + $0x180] sm:$0xff]
    %v128 = vld [vmem:[#allocation5 + $0x188] sm:$0xff]
    %v129 = vld [vmem:[#allocation5 + $0x190] sm:$0xff]
    %v130 = vld [vmem:[#allocation5 + $0x198] sm:$0xff]
    %v131 = vld [vmem:[#allocation5 + $0x1a0] sm:$0xff]
    %v132 = vld [vmem:[#allocation5 + $0x1a8] sm:$0xff]
    %v133 = vld [vmem:[#allocation5 + $0x1b0] sm:$0xff]
    %v134 = vld [vmem:[#allocation5 + $0x1b8] sm:$0xff]
    %v135 = vld [vmem:[#allocation5 + $0x1c0] sm:$0xff]
    %v136 = vld [vmem:[#allocation5 + $0x1c8] sm:$0xff]
    %v137 = vld [vmem:[#allocation5 + $0x1d0] sm:$0xff]
    %v138 = vld [vmem:[#allocation5 + $0x1d8] sm:$0xff]
    %v139 = vld [vmem:[#allocation5 + $0x1e0] sm:$0xff]
    %v140 = vld [vmem:[#allocation5 + $0x1e8] sm:$0xff]
    %v141 = vld [vmem:[#allocation5 + $0x1f0] sm:$0xff]
    %v142 = vld [vmem:[#allocation5 + $0x1f8] sm:$0xff]
    %v143 = vld [vmem:[#allocation5 + $0x200] sm:$0xff]
    %v144 = vld [vmem:[#allocation5 + $0x208] sm:$0xff]
    %v145 = vld [vmem:[#allocation5 + $0x210] sm:$0xff]
    %v146 = vld [vmem:[#allocation5 + $0x218] sm:$0xff]
    %v147 = vld [vmem:[#allocation5 + $0x220] sm:$0xff]
    %v148 = vld [vmem:[#allocation5 + $0x228] sm:$0xff]
    %v149 = vld [vmem:[#allocation5 + $0x230] sm:$0xff]
    %v150 = vld [vmem:[#allocation5 + $0x238] sm:$0xff]
    %vm151 = vcmask 523264
    %v153 = vsel %vm151, %v63, 0
    %v156 = vsel %vm151, %v68, 0
    %v159 = vsel %vm151, %v73, 0
    %v162 = vsel %vm151, %v78, 0
    %164 = vmatprep.subr.mxu0 0.0
    %165 = vmatpush1.msra.mxu0 %v79
    %166 = vmatprep.subr.mxu0 0.0
    %167 = vmatpush1.msra.mxu0 %v80
    %168 = vmatprep.subr.mxu0 0.0
    %169 = vmatpush1.msra.mxu0 %v81
    %170 = vmatprep.subr.mxu0 0.0
    %171 = vmatpush1.msra.mxu0 %v82
    %172 = vmatprep.subr.mxu0 0.0
    %173 = vmatpush1.msra.mxu0 %v83
    %174 = vmatprep.subr.mxu0 0.0
    %175 = vmatpush1.msra.mxu0 %v84
    %176 = vmatprep.subr.mxu0 0.0
    %177 = vmatpush1.msra.mxu0 %v85
    %178 = vmatprep.subr.mxu0 0.0
    %179 = vmatpush1.msra.mxu0 %v86
    %180 = vmatprep.subr.mxu0 0.0
    %181 = vmatpush1.msra.mxu0 %v87
    %182 = vmatprep.subr.mxu0 0.0
    %183 = vmatpush1.msra.mxu0 %v88
    %184 = vmatprep.subr.mxu0 0.0
    %185 = vmatpush1.msra.mxu0 %v89
    %186 = vmatprep.subr.mxu0 0.0
    %187 = vmatpush1.msra.mxu0 %v90
    %188 = vmatprep.subr.mxu0 0.0
    %189 = vmatpush1.msra.mxu0 %v91
    %190 = vmatprep.subr.mxu0 0.0
    %191 = vmatpush1.msra.mxu0 %v92
    %192 = vmatprep.subr.mxu0 0.0
    %193 = vmatpush1.msra.mxu0 %v93
    %194 = vmatprep.subr.mxu0 0.0
    %195 = vmatpush1.msra.mxu0 %v94
    %196 = vmatprep.subr.mxu0 0.0
    %197 = vmatpush1.msra.mxu0 %v95
    %198 = vmatprep.subr.mxu0 0.0
    %199 = vmatpush1.msra.mxu0 %v96
    %200 = vmatprep.subr.mxu0 0.0
    %201 = vmatpush1.msra.mxu0 %v97
    %202 = vmatprep.subr.mxu0 0.0
    %203 = vmatpush1.msra.mxu0 %v98
    %204 = vmatprep.subr.mxu0 0.0
    %205 = vmatpush1.msra.mxu0 %v99
    %206 = vmatprep.subr.mxu0 0.0
    %207 = vmatpush1.msra.mxu0 %v100
    %208 = vmatprep.subr.mxu0 0.0
    %209 = vmatpush1.msra.mxu0 %v101
    %210 = vmatprep.subr.mxu0 0.0
    %211 = vmatpush1.msra.mxu0 %v102
    %212 = vmatprep.subr.mxu0 0.0
    %213 = vmatpush1.msra.mxu0 %v103
    %214 = vmatprep.subr.mxu0 0.0
    %215 = vmatpush1.msra.mxu0 %v104
    %216 = vmatprep.subr.mxu0 0.0
    %217 = vmatpush1.msra.mxu0 %v105
    %218 = vmatprep.subr.mxu0 0.0
    %219 = vmatpush1.msra.mxu0 %v106
    %220 = vmatprep.subr.mxu0 0.0
    %221 = vmatpush1.msra.mxu0 %v107
    %222 = vmatprep.subr.mxu0 0.0
    %223 = vmatpush1.msra.mxu0 %v108
    %224 = vmatprep.subr.mxu0 0.0
    %225 = vmatpush1.msra.mxu0 %v109
    %226 = vmatprep.subr.mxu0 0.0
    %227 = vmatpush1.msra.mxu0 %v110
    %228 = vmatprep.mubr.f32.mxu0 %v60
    %229 = vmatmul.mubr.f32.gmra.mrb[0].mxu0 %v59
    %v230 = vpop.f32.mrb[0].mxu0
    %v231 = vadd.f32 0.0, %v230
    %v232 = vpop.f32.mrb[0].mxu0
    %233 = vmatprep.mubr.f32.mxu0 %v65
    %234 = vmatmul.mubr.f32.gmra.mrb[0].mxu0 %v64
    %v235 = vpop.f32.mrb[0].mxu0
    %v236 = vadd.f32 0.0, %v235
    %v237 = vpop.f32.mrb[0].mxu0
    %238 = vmatprep.mubr.f32.mxu0 %v70
    %239 = vmatmul.mubr.f32.gmra.mrb[0].mxu0 %v69
    %v240 = vpop.f32.mrb[0].mxu0
    %v241 = vadd.f32 0.0, %v240
    %v242 = vpop.f32.mrb[0].mxu0
    %243 = vmatprep.mubr.f32.mxu0 %v75
    %244 = vmatmul.mubr.f32.gmra.mrb[0].mxu0 %v74
    %v245 = vpop.f32.mrb[0].mxu0
    %v246 = vadd.f32 0.0, %v245
    %v247 = vpop.f32.mrb[0].mxu0
    %248 = vdwg.mxu0
    %249 = vmatprep.subr.mxu0 0.0
    %250 = vmatpush1.msra.mxu0 %v111
    %251 = vmatprep.subr.mxu0 0.0
    %252 = vmatpush1.msra.mxu0 %v112
    %253 = vmatprep.subr.mxu0 0.0
    %254 = vmatpush1.msra.mxu0 %v113
    %255 = vmatprep.subr.mxu0 0.0
    %256 = vmatpush1.msra.mxu0 %v114
    %257 = vmatprep.subr.mxu0 0.0
    %258 = vmatpush1.msra.mxu0 %v115
    %259 = vmatprep.subr.mxu0 0.0
    %260 = vmatpush1.msra.mxu0 %v116
    %261 = vmatprep.subr.mxu0 0.0
    %262 = vmatpush1.msra.mxu0 %v117
    %263 = vmatprep.subr.mxu0 0.0
    %264 = vmatpush1.msra.mxu0 %v118
    %265 = vmatprep.subr.mxu0 0.0
    %266 = vmatpush1.msra.mxu0 %v119
    %267 = vmatprep.subr.mxu0 0.0
    %268 = vmatpush1.msra.mxu0 %v120
    %269 = vmatprep.subr.mxu0 0.0
    %270 = vmatpush1.msra.mxu0 %v121
    %271 = vmatprep.subr.mxu0 0.0
    %272 = vmatpush1.msra.mxu0 %v122
    %273 = vmatprep.subr.mxu0 0.0
    %274 = vmatpush1.msra.mxu0 %v123
    %275 = vmatprep.subr.mxu0 0.0
    %276 = vmatpush1.msra.mxu0 %v124
    %277 = vmatprep.subr.mxu0 0.0
    %278 = vmatpush1.msra.mxu0 %v125
    %279 = vmatprep.subr.mxu0 0.0
    %280 = vmatpush1.msra.mxu0 %v126
    %281 = vmatprep.subr.mxu0 0.0
    %282 = vmatpush1.msra.mxu0 %v127
    %283 = vmatprep.subr.mxu0 0.0
    %284 = vmatpush1.msra.mxu0 %v128
    %285 = vmatprep.subr.mxu0 0.0
    %286 = vmatpush1.msra.mxu0 %v129
    %287 = vmatprep.subr.mxu0 0.0
    %288 = vmatpush1.msra.mxu0 %v130
    %289 = vmatprep.subr.mxu0 0.0
    %290 = vmatpush1.msra.mxu0 %v131
    %291 = vmatprep.subr.mxu0 0.0
    %292 = vmatpush1.msra.mxu0 %v132
    %293 = vmatprep.subr.mxu0 0.0
    %294 = vmatpush1.msra.mxu0 %v133
    %295 = vmatprep.subr.mxu0 0.0
    %296 = vmatpush1.msra.mxu0 %v134
    %297 = vmatprep.subr.mxu0 0.0
    %298 = vmatpush1.msra.mxu0 %v135
    %299 = vmatprep.subr.mxu0 0.0
    %300 = vmatpush1.msra.mxu0 %v136
    %301 = vmatprep.subr.mxu0 0.0
    %302 = vmatpush1.msra.mxu0 %v137
    %303 = vmatprep.subr.mxu0 0.0
    %304 = vmatpush1.msra.mxu0 %v138
    %305 = vmatprep.subr.mxu0 0.0
    %306 = vmatpush1.msra.mxu0 %v139
    %307 = vmatprep.subr.mxu0 0.0
    %308 = vmatpush1.msra.mxu0 %v140
    %309 = vmatprep.subr.mxu0 0.0
    %310 = vmatpush1.msra.mxu0 %v141
    %311 = vmatprep.subr.mxu0 0.0
    %312 = vmatpush1.msra.mxu0 %v142
    %313 = vmatprep.mubr.f32.mxu0 %v62
    %314 = vmatmul.mubr.f32.gmra.mrb[0].mxu0 %v61
    %v315 = vpop.f32.mrb[0].mxu0
    %v316 = vadd.f32 %v231, %v315
    %v317 = vpop.f32.mrb[0].mxu0
    %318 = vmatprep.mubr.f32.mxu0 %v67
    %319 = vmatmul.mubr.f32.gmra.mrb[0].mxu0 %v66
    %v320 = vpop.f32.mrb[0].mxu0
    %v321 = vadd.f32 %v236, %v320
    %v322 = vpop.f32.mrb[0].mxu0
    %323 = vmatprep.mubr.f32.mxu0 %v72
    %324 = vmatmul.mubr.f32.gmra.mrb[0].mxu0 %v71
    %v325 = vpop.f32.mrb[0].mxu0
    %v326 = vadd.f32 %v241, %v325
    %v327 = vpop.f32.mrb[0].mxu0
    %328 = vmatprep.mubr.f32.mxu0 %v77
    %329 = vmatmul.mubr.f32.gmra.mrb[0].mxu0 %v76
    %v330 = vpop.f32.mrb[0].mxu0
    %v331 = vadd.f32 %v246, %v330
    %v332 = vpop.f32.mrb[0].mxu0
    %333 = vdwg.mxu0
    %334 = vmatprep.subr.mxu0 0.0
    %335 = vmatpush1.msra.mxu0 %v143
    %336 = vmatprep.subr.mxu0 0.0
    %337 = vmatpush1.msra.mxu0 %v144
    %338 = vmatprep.subr.mxu0 0.0
    %339 = vmatpush1.msra.mxu0 %v145
    %340 = vmatprep.subr.mxu0 0.0
    %341 = vmatpush1.msra.mxu0 %v146
    %342 = vmatprep.subr.mxu0 0.0
    %343 = vmatpush1.msra.mxu0 %v147
    %344 = vmatprep.subr.mxu0 0.0
    %345 = vmatpush1.msra.mxu0 %v148
    %346 = vmatprep.subr.mxu0 0.0
    %347 = vmatpush1.msra.mxu0 %v149
    %348 = vmatprep.subr.mxu0 0.0
    %349 = vmatpush1.msra.mxu0 %v150
    %350 = vmatprep.subr.mxu0 0.0
    %351 = vmatpush1.msra.mxu0 0.0
    %352 = vmatprep.subr.mxu0 0.0
    %353 = vmatpush1.msra.mxu0 0.0
    %354 = vmatprep.subr.mxu0 0.0
    %355 = vmatpush1.msra.mxu0 0.0
    %356 = vmatprep.subr.mxu0 0.0
    %357 = vmatpush1.msra.mxu0 0.0
    %358 = vmatprep.subr.mxu0 0.0
    %359 = vmatpush1.msra.mxu0 0.0
    %360 = vmatprep.subr.mxu0 0.0
    %361 = vmatpush1.msra.mxu0 0.0
    %362 = vmatprep.subr.mxu0 0.0
    %363 = vmatpush1.msra.mxu0 0.0
    %364 = vmatprep.subr.mxu0 0.0
    %365 = vmatpush1.msra.mxu0 0.0
    %366 = vmatprep.subr.mxu0 0.0
    %367 = vmatpush1.msra.mxu0 0.0
    %368 = vmatprep.subr.mxu0 0.0
    %369 = vmatpush1.msra.mxu0 0.0
    %370 = vmatprep.subr.mxu0 0.0
    %371 = vmatpush1.msra.mxu0 0.0
    %372 = vmatprep.subr.mxu0 0.0
    %373 = vmatpush1.msra.mxu0 0.0
    %374 = vmatprep.subr.mxu0 0.0
    %375 = vmatpush1.msra.mxu0 0.0
    %376 = vmatprep.subr.mxu0 0.0
    %377 = vmatpush1.msra.mxu0 0.0
    %378 = vmatprep.subr.mxu0 0.0
    %379 = vmatpush1.msra.mxu0 0.0
    %380 = vmatprep.subr.mxu0 0.0
    %381 = vmatpush1.msra.mxu0 0.0
    %382 = vmatprep.subr.mxu0 0.0
    %383 = vmatpush1.msra.mxu0 0.0
    %384 = vmatprep.subr.mxu0 0.0
    %385 = vmatpush1.msra.mxu0 0.0
    %386 = vmatprep.subr.mxu0 0.0
    %387 = vmatpush1.msra.mxu0 0.0
    %388 = vmatprep.subr.mxu0 0.0
    %389 = vmatpush1.msra.mxu0 0.0
    %390 = vmatprep.subr.mxu0 0.0
    %391 = vmatpush1.msra.mxu0 0.0
    %392 = vmatprep.subr.mxu0 0.0
    %393 = vmatpush1.msra.mxu0 0.0
    %394 = vmatprep.subr.mxu0 0.0
    %395 = vmatpush1.msra.mxu0 0.0
    %396 = vmatprep.subr.mxu0 0.0
    %397 = vmatpush1.msra.mxu0 0.0
    %398 = vmatprep.mubr.f32.mxu0 0.0
    %399 = vmatmul.mubr.f32.gmra.mrb[0].mxu0 %v153
    %v400 = vpop.f32.mrb[0].mxu0
    %v401 = vadd.f32 %v316, %v400
    %v402 = vpop.f32.mrb[0].mxu0
    %403 = vmatprep.mubr.f32.mxu0 0.0
    %404 = vmatmul.mubr.f32.gmra.mrb[0].mxu0 %v156
    %v405 = vpop.f32.mrb[0].mxu0
    %v406 = vadd.f32 %v321, %v405
    %v407 = vpop.f32.mrb[0].mxu0
    %408 = vmatprep.mubr.f32.mxu0 0.0
    %409 = vmatmul.mubr.f32.gmra.mrb[0].mxu0 %v159
    %v410 = vpop.f32.mrb[0].mxu0
    %v411 = vadd.f32 %v326, %v410
    %v412 = vpop.f32.mrb[0].mxu0
    %413 = vmatprep.mubr.f32.mxu0 0.0
    %414 = vmatmul.mubr.f32.gmra.mrb[0].mxu0 %v162
    %v415 = vpop.f32.mrb[0].mxu0
    %v416 = vadd.f32 %v331, %v415
    %v417 = vpop.f32.mrb[0].mxu0
    %418 = vdwg.mxu0
    %v419 = vadd.f32 %v401, %v406
    %v420 = vadd.f32 %v419, %v411
    %v421 = vadd.f32 %v420, %v416
    %v422 = vrot.slane %v421, 4
    %v423 = vadd.f32 %v421, %v422
    %v424 = vrot.slane %v423, 2
    %v425 = vadd.f32 %v423, %v424
    %v426 = vrot.slane %v425, 1
    %v427 = vadd.f32 %v425, %v426
    %v428 = vmul.f32 %v401, %v401
    %v429 = vmul.f32 %v406, %v406
    %v430 = vmul.f32 %v411, %v411
    %v431 = vmul.f32 %v416, %v416
    %v432 = vadd.f32 %v428, %v429
    %v433 = vadd.f32 %v432, %v430
    %v434 = vadd.f32 %v433, %v431
    %v435 = vrot.slane %v434, 4
    %v436 = vadd.f32 %v434, %v435
    %v437 = vrot.slane %v436, 2
    %v438 = vadd.f32 %v436, %v437
    %v439 = vrot.slane %v438, 1
    %v440 = vadd.f32 %v438, %v439
    %vm441 = vcmask 1040384
    %v442 = vsel %vm441, %v427, %v440
    %v443 = vld [vmem:[#allocation7] sm:$0xff]
    %v444 = vld [vmem:[#allocation7 + $0x8] sm:$0xff]
    %v445 = vld [vmem:[#allocation7 + $0x10] sm:$0xff]
    %v446 = vld [vmem:[#allocation7 + $0x18] sm:$0xff]
    %v447 = vld [vmem:[#allocation7 + $0x20] sm:$0xff]
    %v448 = vld [vmem:[#allocation7 + $0x28] sm:$0xff]
    %v449 = vld [vmem:[#allocation7 + $0x30] sm:$0xff]
    %v450 = vld [vmem:[#allocation7 + $0x38] sm:$0xff]
    %v451 = vld [vmem:[#allocation7 + $0x40] sm:$0xff]
    %v452 = vld [vmem:[#allocation7 + $0x48] sm:$0xff]
    %v453 = vld [vmem:[#allocation7 + $0x50] sm:$0xff]
    %v454 = vld [vmem:[#allocation7 + $0x58] sm:$0xff]
    %v455 = vld [vmem:[#allocation7 + $0x60] sm:$0xff]
    %v456 = vld [vmem:[#allocation7 + $0x68] sm:$0xff]
    %v457 = vld [vmem:[#allocation7 + $0x70] sm:$0xff]
    %v458 = vld [vmem:[#allocation7 + $0x78] sm:$0xff]
    %459 = vmatprep.subr.mxu0 0.0
    %460 = vmatpush1.msra.mxu0 %v443
    %461 = vmatprep.subr.mxu0 0.0
    %462 = vmatpush1.msra.mxu0 %v444
    %463 = vmatprep.subr.mxu0 0.0
    %464 = vmatpush1.msra.mxu0 %v445
    %465 = vmatprep.subr.mxu0 0.0
    %466 = vmatpush1.msra.mxu0 %v446
    %467 = vmatprep.subr.mxu0 0.0
    %468 = vmatpush1.msra.mxu0 %v447
    %469 = vmatprep.subr.mxu0 0.0
    %470 = vmatpush1.msra.mxu0 %v448
    %471 = vmatprep.subr.mxu0 0.0
    %472 = vmatpush1.msra.mxu0 %v449
    %473 = vmatprep.subr.mxu0 0.0
    %474 = vmatpush1.msra.mxu0 %v450
    %475 = vmatprep.subr.mxu0 0.0
    %476 = vmatpush1.msra.mxu0 %v451
    %477 = vmatprep.subr.mxu0 0.0
    %478 = vmatpush1.msra.mxu0 %v452
    %479 = vmatprep.subr.mxu0 0.0
    %480 = vmatpush1.msra.mxu0 %v453
    %481 = vmatprep.subr.mxu0 0.0
    %482 = vmatpush1.msra.mxu0 %v454
    %483 = vmatprep.subr.mxu0 0.0
    %484 = vmatpush1.msra.mxu0 %v455
    %485 = vmatprep.subr.mxu0 0.0
    %486 = vmatpush1.msra.mxu0 %v456
    %487 = vmatprep.subr.mxu0 0.0
    %488 = vmatpush1.msra.mxu0 %v457
    %489 = vmatprep.subr.mxu0 0.0
    %490 = vmatpush1.msra.mxu0 %v458
    %491 = vmatprep.subr.mxu0 0.0
    %492 = vmatpush1.msra.mxu0 0.0
    %493 = vmatprep.subr.mxu0 0.0
    %494 = vmatpush1.msra.mxu0 0.0
    %495 = vmatprep.subr.mxu0 0.0
    %496 = vmatpush1.msra.mxu0 0.0
    %497 = vmatprep.subr.mxu0 0.0
    %498 = vmatpush1.msra.mxu0 0.0
    %499 = vmatprep.subr.mxu0 0.0
    %500 = vmatpush1.msra.mxu0 0.0
    %501 = vmatprep.subr.mxu0 0.0
    %502 = vmatpush1.msra.mxu0 0.0
    %503 = vmatprep.subr.mxu0 0.0
    %504 = vmatpush1.msra.mxu0 0.0
    %505 = vmatprep.subr.mxu0 0.0
    %506 = vmatpush1.msra.mxu0 0.0
    %507 = vmatprep.subr.mxu0 0.0
    %508 = vmatpush1.msra.mxu0 0.0
    %509 = vmatprep.subr.mxu0 0.0
    %510 = vmatpush1.msra.mxu0 0.0
    %511 = vmatprep.subr.mxu0 0.0
    %512 = vmatpush1.msra.mxu0 0.0
    %513 = vmatprep.subr.mxu0 0.0
    %514 = vmatpush1.msra.mxu0 0.0
    %515 = vmatprep.subr.mxu0 0.0
    %516 = vmatpush1.msra.mxu0 0.0
    %517 = vmatprep.subr.mxu0 0.0
    %518 = vmatpush1.msra.mxu0 0.0
    %519 = vmatprep.subr.mxu0 0.0
    %520 = vmatpush1.msra.mxu0 0.0
    %521 = vmatprep.subr.mxu0 0.0
    %522 = vmatpush1.msra.mxu0 0.0
    %523 = vmatprep.mubr.f32.mxu0 0.0
    %524 = vmatmul.mubr.f32.gmra.mrb[0].mxu0 %v442
    %v525 = vpop.f32.mrb[0].mxu0
    %v526 = vadd.f32 0.0, %v525
    %v527 = vpop.f32.mrb[0].mxu0
    %528 = vdwg.mxu0
    %v529 = vmul.f32 %v526, 0.001953125
    %v530 = vmul.f32 %v529, %v529
    %v532 = vrot.slane %v530, 7
    %v534 = vsub.f32 %v529, %v532
    %v535 = vld [vmem:[%s3] sm:$0x3]
    %v536 = vadd.f32 %v534, 1e-05
    %v537 = vrsqrt.pop %v536
    %v539 = vrot.slane %v537, 1
    %v541 = vmul.f32 %v535, %v539
    %v542 = vmul.f32 %v529, %v541
    %v544 = vrot.slane %v542, 7
    %v546 = vsub.f32 %v535, %v544
    %v547 = vlaneseq
    %v548 = vshrl.u32 %v547, 7
    %v549 = vsub.s32 0, %v548
    %v550 = vrot.slane %v541, %v549
    %v551 = vmul.f32 %v401, %v550
    %v552 = vmul.f32 %v406, %v550
    %v553 = vmul.f32 %v411, %v550
    %v554 = vmul.f32 %v416, %v550
    %v555 = vlaneseq
    %v556 = vshrl.u32 %v555, 7
    %v557 = vsub.s32 1, %v556
    %v558 = vrot.slane %v546, %v557
    %v559 = vadd.f32 %v551, %v558
    %v560 = vadd.f32 %v552, %v558
    %v561 = vadd.f32 %v553, %v558
    %v562 = vadd.f32 %v554, %v558
    %v563 = vmax.f32 %v559, 0.0
    %v564 = vmax.f32 %v560, 0.0
    %v565 = vmax.f32 %v561, 0.0
    %v566 = vmax.f32 %v562, 0.0
    %567 = vst [vmem:[#allocation8] sm:$0xff] %v563
    %568 = vst [vmem:[#allocation8 + $0x8] sm:$0xff] %v564
    %569 = vst [vmem:[#allocation8 + $0x10] sm:$0xff] %v565
    %570 = vst [vmem:[#allocation8 + $0x18] sm:$0xff] %v566
    // Predicated region
    $region30: #{tpu_custom_call.1} parent=1 // pred_check
      _
    $region31: #{tpu_custom_call.1} parent=1 // pred_check_branch
      %572 = sbr.rel (0) target = $region33
    $region32: #{tpu_custom_call.1} parent=1 // pred_region
      %s574 = ssub.s32 512, 512
      %575 = vsyncadd [#allocation4], %s574
      %s576 = sshll.u32 [#allocation8], 4
      %s577 = int_to_ptr.vmem [resolvable:$true] %s576
      %582 = dma.vmem_to_hbm [thread:$0]  %s577, 512, %s4, [#allocation4], 128, 128, 8
    $region33: #{tpu_custom_call.1} parent=1 // pred_fallthru
      _
    // Predicated region
    $region34: #{tpu_custom_call.1} parent=1 // pred_check
      _
    $region35: #{tpu_custom_call.1} parent=1 // pred_check_branch
      %584 = sbr.rel (0) target = $region37
    $region36: #{tpu_custom_call.1} parent=1 // pred_region
      %585 = dma.done [#allocation4], 512
    $region37: #{tpu_custom_call.1} parent=1 // pred_fallthru
      _
    %586 = vsyncpa [#allocation3], 1
    %587 = vsyncpa [#allocation6], 1
    %588 = vsyncpa [#allocation4], 1

</llo_original>
